<compile_context>
chip_gen: v7x
topology: tpu7x:2x2x1
jax: 0.10.0
libtpu: 0.0.40
codegen_flags: <defaults>
</compile_context>

<pallas_src>
import jax
import jax.numpy as jnp
from jax import lax
from jax.experimental import pallas as pl
from jax.experimental.pallas import tpu as pltpu


def _round_up(x, m):
    return ((x + m - 1) // m) * m


def _vmem_budget_bytes():
    """Generation-aware VMEM budget (leave ~25% headroom for Mosaic scratch)."""
    try:
        cap = pltpu.get_tpu_info().vmem_capacity_bytes
    except Exception:
        cap = 64 * 1024 * 1024  # conservative fallback (v7x-class per-TC VMEM)
    return max(int(cap * 0.75), 32 * 1024 * 1024)


def _plan_bytes(tm, tk, tn, x_b, w_b, o_b, tiled):
    """Estimated VMEM footprint of the tile plan (double-buffered BlockSpecs)."""
    b = 2 * tm * tk * x_b          # x tiles
    b += 2 * tk * tn * w_b         # weight tiles (dominant stream)
    b += 2 * 8 * tn * 4            # bias tile (sublane-padded)
    b += 2 * tm * tn * o_b         # output tiles
    if tiled:
        b += tm * tn * 4           # f32 accumulator scratch
    return b


# ---------------------------------------------------------------------------
# Kernels
# ---------------------------------------------------------------------------

def _linear_single_pass_kernel(x_ref, w_ref, b_ref, o_ref):
    # x_ref: (tm, K) mxu_dtype, w_ref: (K, tn) mxu_dtype (already (in, out) layout),
    # b_ref: (1, tn) f32. Whole contraction in one MXU pass; bias fused into store.
    acc = lax.dot_general(
        x_ref[...], w_ref[...],
        dimension_numbers=(((1,), (0,)), ((), ())),
        preferred_element_type=jnp.float32,
    )
    o_ref[...] = (acc + b_ref[...]).astype(o_ref.dtype)


def _linear_tiled_k_kernel(x_ref, w_ref, b_ref, o_ref, acc_ref):
    # Fallback for very large in_features: K is tiled, f32 accumulator persists
    # across the reduction axis. Accumulator is seeded with the bias at k == 0 so
    # the last step is a pure cast/store.
    k = pl.program_id(2)

    @pl.when(k == 0)
    def _():
        acc_ref[...] = jnp.broadcast_to(b_ref[...], acc_ref.shape).astype(jnp.float32)

    acc_ref[...] += lax.dot_general(
        x_ref[...], w_ref[...],
        dimension_numbers=(((1,), (0,)), ((), ())),
        preferred_element_type=jnp.float32,
    )

    @pl.when(k == pl.num_programs(2) - 1)
    def _():
        o_ref[...] = acc_ref[...].astype(o_ref.dtype)


# ---------------------------------------------------------------------------
# Head construction (one-time parameter prep) + forward
# ---------------------------------------------------------------------------

def make_distributional_head(weight, bias, out_features, atoms, *,
                             use_bf16_mxu=True, tm_max=512, tn_max=512,
                             force_tk=None, vmem_budget=None):
    """Build the forward fn for _DistributionalBase with a Linear inner layer.

    weight: (out_features*atoms, in_features)  -- PyTorch nn.Linear layout
    bias:   (out_features*atoms,)
    Returns forward(x: (..., in_features)) -> (..., out_features, atoms).
    """
    out_total, in_features = weight.shape
    assert out_total == out_features * atoms
    assert bias.shape == (out_total,)

    N, K = out_total, in_features
    mxu_dtype = jnp.bfloat16 if use_bf16_mxu else jnp.dtype(weight.dtype)
    x_b = jnp.dtype(mxu_dtype).itemsize
    w_b = x_b
    o_b = jnp.dtype(weight.dtype).itemsize

    budget = _vmem_budget_bytes() if vmem_budget is None else vmem_budget

    tn = min(tn_max, _round_up(N, 128))
    Np = _round_up(N, tn)

    # Prefer a single K pass: no accumulator, no reduction grid axis, and (with
    # tm covering the batch) the weight streamed exactly once per forward.
    if force_tk is None and _plan_bytes(tm_max, K, tn, x_b, w_b, o_b, tiled=False) <= budget:
        tiled, tk, Kp = False, K, K
    else:
        tiled = True
        if force_tk is not None:
            tk = force_tk
        else:
            tk = 128
            for cand in (2048, 1024, 512, 256, 128):
                c = min(cand, _round_up(K, 128))
                if _plan_bytes(tm_max, c, tn, x_b, w_b, o_b, tiled=True) <= budget:
                    tk = c
                    break
        Kp = _round_up(K, tk)

    # One-time parameter prep (outside the hot path): transpose to (in, out) so the
    # kernel feeds the MXU without transposes, zero-pad to tile multiples, cast the
    # weight to the MXU dtype once (halves its per-call HBM stream).
    w_kn = jnp.asarray(weight).T
    w_kn = jnp.pad(w_kn, ((0, Kp - K), (0, Np - N))).astype(mxu_dtype)
    b_p = jnp.pad(jnp.asarray(bias), (0, Np - N)).reshape(1, Np).astype(jnp.float32)
    w_kn = jax.device_put(w_kn)
    b_p = jax.device_put(b_p)

    def forward(x):
        assert x.shape[-1] == K
        leading = x.shape[:-1]
        out_dtype = x.dtype

        x2 = x.reshape(-1, K)
        M = x2.shape[0]

        # Clamp tm so the whole batch fits one M tile for typical RL batch sizes.
        tm = min(tm_max, _round_up(max(M, 1), 8))
        Mp = _round_up(M, tm)

        x2 = x2.astype(mxu_dtype)
        if Mp != M or Kp != K:
            x2 = jnp.pad(x2, ((0, Mp - M), (0, Kp - K)))

        plan = _plan_bytes(tm, tk, tn, x_b, w_b, jnp.dtype(out_dtype).itemsize, tiled)
        vmem_limit = max(32 * 1024 * 1024, min(budget, plan + 16 * 1024 * 1024))

        if not tiled:
            grid = (Mp // tm, Np // tn)
            out_p = pl.pallas_call(
                _linear_single_pass_kernel,
                out_shape=jax.ShapeDtypeStruct((Mp, Np), out_dtype),
                grid_spec=pltpu.PrefetchScalarGridSpec(
                    num_scalar_prefetch=0,
                    grid=grid,
                    in_specs=[
                        pl.BlockSpec((tm, Kp), lambda i, j: (i, 0)),   # x
                        pl.BlockSpec((Kp, tn), lambda i, j: (0, j)),   # weight (in, out)
                        pl.BlockSpec((1, tn), lambda i, j: (0, j)),    # bias
                    ],
                    out_specs=pl.BlockSpec((tm, tn), lambda i, j: (i, j)),
                ),
                compiler_params=pltpu.CompilerParams(
                    dimension_semantics=("parallel", "parallel"),
                    vmem_limit_bytes=vmem_limit,
                ),
            )(x2, w_kn, b_p)
        else:
            grid = (Mp // tm, Np // tn, Kp // tk)
            out_p = pl.pallas_call(
                _linear_tiled_k_kernel,
                out_shape=jax.ShapeDtypeStruct((Mp, Np), out_dtype),
                grid_spec=pltpu.PrefetchScalarGridSpec(
                    num_scalar_prefetch=0,
                    grid=grid,
                    in_specs=[
                        pl.BlockSpec((tm, tk), lambda i, j, k: (i, k)),   # x
                        pl.BlockSpec((tk, tn), lambda i, j, k: (k, j)),   # weight (in, out)
                        pl.BlockSpec((1, tn), lambda i, j, k: (0, j)),    # bias
                    ],
                    out_specs=pl.BlockSpec((tm, tn), lambda i, j, k: (i, j)),
                    scratch_shapes=[pltpu.VMEM((tm, tn), jnp.float32)],
                ),
                compiler_params=pltpu.CompilerParams(
                    dimension_semantics=("parallel", "parallel", "arbitrary"),
                    vmem_limit_bytes=vmem_limit,
                ),
            )(x2, w_kn, b_p)

        out = out_p[:M, :N]
        # The `.view(*dims)` from the PyTorch module: free reshape in the wrapper.
        return out.reshape(*leading, out_features, atoms)

    return forward


if __name__ == "__main__":
    key = jax.random.PRNGKey(0)
    kx, kw, kb, kx2, kw2, kb2 = jax.random.split(key, 6)

    # --- Demo 1: small shapes consistent with the module (single-K-pass path,
    #     bf16 MXU default, f32 accumulate).
    batch, in_features, out_features, atoms = 2, 32, 4, 8
    out_total = out_features * atoms
    bound = 1.0 / (in_features ** 0.5)
    x = jax.random.normal(kx, (batch, in_features), dtype=jnp.float32)
    weight = jax.random.uniform(kw, (out_total, in_features), minval=-bound,
                                maxval=bound, dtype=jnp.float32)
    bias = jax.random.uniform(kb, (out_total,), minval=-bound, maxval=bound,
                              dtype=jnp.float32)

    head = make_distributional_head(weight, bias, out_features, atoms)
    y = jax.block_until_ready(head(x))
    assert y.shape == (batch, out_features, atoms)

    # Reference with matching numerics (bf16 operands, f32 accumulate + f32 bias).
    ref = (x.astype(jnp.bfloat16).astype(jnp.float32)
           @ weight.astype(jnp.bfloat16).astype(jnp.float32).T + bias)
    ref = ref.reshape(batch, out_features, atoms)
    assert jnp.allclose(y, ref, atol=1e-4, rtol=1e-4)

    # --- Demo 2: exercise the K-tiled accumulator fallback (f32 path, forced
    #     tk=128 so the reduction grid axis really has multiple steps).
    b2, k2, of2, at2 = 5, 260, 3, 50
    n2 = of2 * at2
    x2 = jax.random.normal(kx2, (b2, k2), dtype=jnp.float32)
    w2 = jax.random.normal(kw2, (n2, k2), dtype=jnp.float32) * 0.05
    bi2 = jax.random.normal(kb2, (n2,), dtype=jnp.float32) * 0.05
    head2 = make_distributional_head(w2, bi2, of2, at2,
                                     use_bf16_mxu=False, force_tk=128)
    y2 = jax.block_until_ready(head2(x2))
    ref2 = (x2 @ w2.T + bi2).reshape(b2, of2, at2)
    assert y2.shape == (b2, of2, at2)
    assert jnp.allclose(y2, ref2, atol=1e-4, rtol=1e-4)

    print("KERNEL_OK")
</pallas_src>

<mosaic_0001>
module attributes {stable_mosaic.version = 11 : i64} {
  func.func @_linear_single_pass_kernel(%arg0: i32, %arg1: i32, %arg2: memref<8x32xbf16, #tpu.memory_space<vmem>>, %arg3: memref<32x128xbf16, #tpu.memory_space<vmem>>, %arg4: memref<1x128xf32, #tpu.memory_space<vmem>>, %arg5: memref<8x128xf32, #tpu.memory_space<vmem>>) attributes {dimension_semantics = [#tpu.dimension_semantics<parallel>, #tpu.dimension_semantics<parallel>], iteration_bounds = array<i64: 1, 1>, scalar_prefetch = 0 : i64, scratch_operands = 0 : i64, tpu.core_type = #tpu.core_type<tc>, window_params = [{transform_indices = @transform_0, window_bounds = array<i64: 8, 32>}, {transform_indices = @transform_1, window_bounds = array<i64: 32, 128>}, {transform_indices = @transform_2, window_bounds = array<i64: 1, 128>}, {transform_indices = @transform_3, window_bounds = array<i64: 8, 128>}]} {
    %c0 = arith.constant 0 : index
    %c0_0 = arith.constant 0 : index
    %0 = vector.load %arg2[%c0, %c0_0] : memref<8x32xbf16, #tpu.memory_space<vmem>>, vector<8x32xbf16>
    %c0_1 = arith.constant 0 : index
    %c0_2 = arith.constant 0 : index
    %1 = vector.load %arg3[%c0_1, %c0_2] : memref<32x128xbf16, #tpu.memory_space<vmem>>, vector<32x128xbf16>
    %cst = arith.constant dense<0.000000e+00> : vector<8x128xf32>
    %2 = tpu.matmul %0, %1, %cst {dimension_numbers = #tpu.dot_dimension_numbers<[1], [0], [0], [1], [0, 0, 1, 1], [], []>} : vector<8x32xbf16>, vector<32x128xbf16>, vector<8x128xf32> -> vector<8x128xf32>
    %c0_3 = arith.constant 0 : index
    %c0_4 = arith.constant 0 : index
    %3 = vector.load %arg4[%c0_3, %c0_4] : memref<1x128xf32, #tpu.memory_space<vmem>>, vector<1x128xf32>
    %4 = vector.broadcast %3 : vector<1x128xf32> to vector<8x128xf32>
    %5 = arith.addf %2, %4 : vector<8x128xf32>
    %c0_5 = arith.constant 0 : index
    %c0_6 = arith.constant 0 : index
    %6 = vector.load %arg5[%c0_5, %c0_6] : memref<8x128xf32, #tpu.memory_space<vmem>>, vector<8x128xf32>
    tpu.vector_store %arg5[%c0_5, %c0_6], %5 {strides = array<i32>} : memref<8x128xf32, #tpu.memory_space<vmem>>, vector<8x128xf32>,
    return
  }
  func.func @transform_0(%arg0: i32, %arg1: i32) -> (i32, i32) {
    %c0_i32 = arith.constant 0 : i32
    %c0_i32_0 = arith.constant 0 : i32
    return %arg0, %c0_i32 : i32, i32
  }
  func.func @transform_1(%arg0: i32, %arg1: i32) -> (i32, i32) {
    %c0_i32 = arith.constant 0 : i32
    %c0_i32_0 = arith.constant 0 : i32
    return %c0_i32, %arg1 : i32, i32
  }
  func.func @transform_2(%arg0: i32, %arg1: i32) -> (i32, i32) {
    %c0_i32 = arith.constant 0 : i32
    %c0_i32_0 = arith.constant 0 : i32
    return %c0_i32, %arg1 : i32, i32
  }
  func.func @transform_3(%arg0: i32, %arg1: i32) -> (i32, i32) {
    %c0_i32 = arith.constant 0 : i32
    return %arg0, %arg1 : i32, i32
  }
}

</mosaic_0001>

<llo_original>
// kernel: tpu_custom_call.1
$region0: #{tpu_custom_call.1}
  #allocation0 [shape = 'u32[]', space=smem, size = 0x4, offset = 0x4, fixed_abs, tag = 'smem constant byte address 0x4 - core index']
  #allocation1 [shape = 'u32[144,128]{1,0:T(1,128)}', space=vmem, size = 0x12000, scoped, tag = 'internal scratch']
  %s0 = inlined_call_operand.hbm [shape: bf16[8,32], index: 0, kind: input, shape index: {}]
  %s1 = inlined_call_operand.hbm [shape: bf16[32,128], index: 1, kind: input, shape index: {}]
  %s2 = inlined_call_operand.vmem [shape: f32[1,128], index: 2, kind: input, shape index: {}]
  %s3 = inlined_call_operand.hbm [shape: f32[8,128], index: 3, kind: output, shape index: {}]
  %s4 = sld [smem:[#allocation0]]
  $region30: #{tpu_custom_call.1} parent=0
    _
  %s6 = ssub.s32 1, %s4
  %s7 = scalar_select 0, %s6, %s4
  $region1: #{tpu_custom_call.1} parent=0
    #allocation2 [shape = 'u8[2048]{0}', space=vmem, size = 0x800, scoped, tag = 'input window, operand 0, single buffered']
    #allocation3 [shape = 's32[1]{0}', space=sflag, size = 0x4, scoped, tag = 'scoped memory for tpu_custom_call.1']
    #allocation4 [shape = 's32[1]{0}', space=sflag, size = 0x4, scoped, tag = 'scoped memory for tpu_custom_call.1']
    #allocation5 [shape = 'u8[8192]{0}', space=vmem, size = 0x2000, scoped, tag = 'input window, operand 1, single buffered']
    #allocation6 [shape = 's32[1]{0}', space=sflag, size = 0x4, scoped, tag = 'scoped memory for tpu_custom_call.1']
    #allocation7 [shape = 'u8[4096]{0}', space=vmem, size = 0x1000, scoped, tag = 'output window, operand 0, single buffered']
    %8 = vsyncpa [#allocation3], 0
    %9 = vsyncpa [#allocation6], 0
    %10 = vsyncpa [#allocation4], 0
    // Predicated region
    $region2: #{tpu_custom_call.1} parent=1 // pred_check
      _
    $region3: #{tpu_custom_call.1} parent=1 // pred_check_branch
      %12 = sbr.rel (0) target = $region5
    $region4: #{tpu_custom_call.1} parent=1 // pred_region
      %s14 = ssub.s32 64, 64
      %15 = vsyncadd [#allocation3], %s14
      %s17 = sshll.u32 [#allocation2], 4
      %s18 = int_to_ptr.vmem [resolvable:$true] %s17
      %20 = dma.hbm_to_vmem [thread:$0]  %s0, 64, %s18, [#allocation3]
    $region5: #{tpu_custom_call.1} parent=1 // pred_fallthru
      _
    // Predicated region
    $region6: #{tpu_custom_call.1} parent=1 // pred_check
      _
    $region7: #{tpu_custom_call.1} parent=1 // pred_check_branch
      %22 = sbr.rel (0) target = $region9
    $region8: #{tpu_custom_call.1} parent=1 // pred_region
      %s24 = ssub.s32 256, 256
      %25 = vsyncadd [#allocation6], %s24
      %s26 = sshll.u32 [#allocation5], 4
      %s27 = int_to_ptr.vmem [resolvable:$true] %s26
      %32 = dma.hbm_to_vmem [thread:$0]  %s1, 256, %s27, [#allocation6], 64, 64, 4
    $region9: #{tpu_custom_call.1} parent=1 // pred_fallthru
      _
    // Predicated region
    $region10: #{tpu_custom_call.1} parent=1 // pred_check
      _
    $region11: #{tpu_custom_call.1} parent=1 // pred_check_branch
      %34 = sbr.rel (0) target = $region13
    $region12: #{tpu_custom_call.1} parent=1 // pred_region
      _
    $region13: #{tpu_custom_call.1} parent=1 // pred_fallthru
      _
    // Predicated region
    $region14: #{tpu_custom_call.1} parent=1 // pred_check
      _
    $region15: #{tpu_custom_call.1} parent=1 // pred_check_branch
      %36 = sbr.rel (0) target = $region17
    $region16: #{tpu_custom_call.1} parent=1 // pred_region
      %37 = dma.done [#allocation3], 64
    $region17: #{tpu_custom_call.1} parent=1 // pred_fallthru
      _
    // Predicated region
    $region18: #{tpu_custom_call.1} parent=1 // pred_check
      _
    $region19: #{tpu_custom_call.1} parent=1 // pred_check_branch
      %39 = sbr.rel (0) target = $region21
    $region20: #{tpu_custom_call.1} parent=1 // pred_region
      %40 = dma.done [#allocation6], 256
    $region21: #{tpu_custom_call.1} parent=1 // pred_fallthru
      _
    %v42 = vld [vmem:[#allocation2] sm:$0xf]
    %v43 = vld [vmem:[#allocation5] sm:$0xf]
    %v44 = vld [vmem:[#allocation5 + $0x4] sm:$0xf]
    %v45 = vld [vmem:[#allocation5 + $0x8] sm:$0xf]
    %v46 = vld [vmem:[#allocation5 + $0xc] sm:$0xf]
    %v47 = vld [vmem:[%s2] sm:$0x1]
    %v49 = vlaneseq
    %v50 = vshrl.u32 %v49, 7
    %v51 = vsub.s32 0, %v50
    %v52 = vrot.slane %v47, %v51
    %v58 = vunpack.c.l.b16 %v43
    %v59 = vunpack.c.l.b16 %v44
    %v60 = vunpack.c.l.b16 %v45
    %v61 = vunpack.c.l.b16 %v46
    %v62 = vpack.c.b16 %v59, %v58
    %v63 = vpack.c.b16 %v61, %v60
    %vm66 = vcmask 261120
    %v68 = vsel %vm66, %v42, 0
    %70 = vmatprep.subr.bf16.mxu0 0
    %71 = vmatpush1.bf16.msra.mxu0 %v62
    %72 = vmatprep.subr.bf16.mxu0 0
    %73 = vmatpush1.bf16.msra.mxu0 %v63
    %74 = vmatprep.subr.bf16.mxu0 0
    %75 = vmatpush1.bf16.msra.mxu0 0
    %76 = vmatprep.subr.bf16.mxu0 0
    %77 = vmatpush1.bf16.msra.mxu0 0
    %78 = vmatprep.subr.bf16.mxu0 0
    %79 = vmatpush1.bf16.msra.mxu0 0
    %80 = vmatprep.subr.bf16.mxu0 0
    %81 = vmatpush1.bf16.msra.mxu0 0
    %82 = vmatprep.subr.bf16.mxu0 0
    %83 = vmatpush1.bf16.msra.mxu0 0
    %84 = vmatprep.subr.bf16.mxu0 0
    %85 = vmatpush1.bf16.msra.mxu0 0
    %86 = vmatprep.subr.bf16.mxu0 0
    %87 = vmatpush1.bf16.msra.mxu0 0
    %88 = vmatprep.subr.bf16.mxu0 0
    %89 = vmatpush1.bf16.msra.mxu0 0
    %90 = vmatprep.subr.bf16.mxu0 0
    %91 = vmatpush1.bf16.msra.mxu0 0
    %92 = vmatprep.subr.bf16.mxu0 0
    %93 = vmatpush1.bf16.msra.mxu0 0
    %94 = vmatprep.subr.bf16.mxu0 0
    %95 = vmatpush1.bf16.msra.mxu0 0
    %96 = vmatprep.subr.bf16.mxu0 0
    %97 = vmatpush1.bf16.msra.mxu0 0
    %98 = vmatprep.subr.bf16.mxu0 0
    %99 = vmatpush1.bf16.msra.mxu0 0
    %100 = vmatprep.subr.bf16.mxu0 0
    %101 = vmatpush1.bf16.msra.mxu0 0
    %102 = vmatprep.mubr.bf16.mxu0 0
    %103 = vmatmul.mubr.bf16.gmra.mrb[0].mxu0 %v68
    %v104 = vpop.f32.mrb[0].mxu0
    %v105 = vadd.f32 %v52, %v104
    %v106 = vpop.f32.mrb[0].mxu0
    %v107 = vpop.f32.mrb[0].mxu0
    %v108 = vpop.f32.mrb[0].mxu0
    %109 = vdwg.mxu0
    %110 = vst [vmem:[#allocation7] sm:$0xff] %v105
    // Predicated region
    $region22: #{tpu_custom_call.1} parent=1 // pred_check
      _
    $region23: #{tpu_custom_call.1} parent=1 // pred_check_branch
      %112 = sbr.rel (0) target = $region25
    $region24: #{tpu_custom_call.1} parent=1 // pred_region
      %s114 = ssub.s32 128, 128
      %115 = vsyncadd [#allocation4], %s114
      %s117 = sshll.u32 [#allocation7], 4
      %s118 = int_to_ptr.vmem [resolvable:$true] %s117
      %120 = dma.vmem_to_hbm [thread:$0]  %s118, 128, %s3, [#allocation4]
    $region25: #{tpu_custom_call.1} parent=1 // pred_fallthru
      _
    // Predicated region
    $region26: #{tpu_custom_call.1} parent=1 // pred_check
      _
    $region27: #{tpu_custom_call.1} parent=1 // pred_check_branch
      %122 = sbr.rel (0) target = $region29
    $region28: #{tpu_custom_call.1} parent=1 // pred_region
      %123 = dma.done [#allocation4], 128
    $region29: #{tpu_custom_call.1} parent=1 // pred_fallthru
      _
    %124 = vsyncpa [#allocation3], 1
    %125 = vsyncpa [#allocation6], 1
    %126 = vsyncpa [#allocation4], 1

</llo_original>
